<compile_context>
chip_gen: v5e
topology: v5e:2x2
jax: 0.10.0
libtpu: 0.0.40
codegen_flags: <defaults>
</compile_context>

<pallas_src>
import jax
import jax.numpy as jnp
from jax import lax
from jax.experimental import pallas as pl
from jax.experimental.pallas import tpu as pltpu

LANES = 128
SUBLANES = 8


def _cdiv(a, b):
    return -(-a // b)


def _round_up(x, m):
    return _cdiv(x, m) * m


def _chip_defaults():
    """(tile_rows, num_cores) defaults derived from the local device kind."""
    try:
        kind = jax.devices()[0].device_kind.lower()
    except Exception:  # pragma: no cover - defensive
        kind = ""
    multi_tc = any(t in kind for t in ("v7", "v4", "v5p"))
    big_vmem = any(t in kind for t in ("v6", "v7"))
    tile_rows = 8192 if big_vmem else 4096  # 4 MiB / 2 MiB per f32 input block
    return tile_rows, (2 if multi_tc else 1)


def _make_kernel(*, tile_rows, steps, needed, spill, last_partial,
                 full_rows, lane_rem):
    """Builds the per-(core, step) kernel.

    BCEWithLogits(pos_weight=pw) per-element loss is affine in pw:
        (1-y)*x + (1 + (pw-1)*y) * softplus(-x)
    so one pass accumulates  S_t = sum(y), S_a = sum((1-y)*x + sp), S_b = sum(y*sp).
    """
    ngroups = tile_rows // SUBLANES
    unroll = min(8, ngroups)

    def kernel(x_ref, y_ref, partial_ref):
        c = pl.program_id(0)
        s = pl.program_id(1)
        block_id = c * steps + s

        @pl.when(s == 0)
        def _init():
            partial_ref[...] = jnp.zeros_like(partial_ref)

        def run(masked):
            tile_start = block_id * tile_rows

            def body(g, carry):
                sy, sa, sb = carry
                r0 = pl.multiple_of(g * SUBLANES, SUBLANES)
                x = x_ref[pl.ds(r0, SUBLANES), :].astype(jnp.float32)
                y = y_ref[pl.ds(r0, SUBLANES), :].astype(jnp.float32)
                # Numerically-stable softplus(-x) = log1p(exp(-|x|)) + max(-x, 0)
                sp = jnp.log1p(jnp.exp(-jnp.abs(x))) + jnp.maximum(-x, 0.0)
                a = (1.0 - y) * x + sp          # pos_weight-independent part
                b = y * sp                      # part scaled by (pos_weight - 1)
                if masked:
                    grow = (tile_start + r0 +
                            lax.broadcasted_iota(jnp.int32, (SUBLANES, LANES), 0))
                    if lane_rem:
                        lane = lax.broadcasted_iota(jnp.int32, (SUBLANES, LANES), 1)
                        valid = (grow < full_rows) | (
                            (grow == full_rows) & (lane < lane_rem))
                    else:
                        valid = grow < full_rows
                    y = jnp.where(valid, y, 0.0)
                    a = jnp.where(valid, a, 0.0)
                    b = jnp.where(valid, b, 0.0)
                return sy + y, sa + a, sb + b

            zero = jnp.zeros((SUBLANES, LANES), jnp.float32)
            sy, sa, sb = lax.fori_loop(0, ngroups, body, (zero, zero, zero),
                                       unroll=unroll)
            partial_ref[0, 0, :, :] += sy
            partial_ref[0, 1, :, :] += sa
            partial_ref[0, 2, :, :] += sb

        if last_partial:
            if needed > 1:
                @pl.when(block_id < needed - 1)
                def _full():
                    run(masked=False)

            @pl.when(block_id == needed - 1)
            def _tail():
                run(masked=True)
        elif spill:
            @pl.when(block_id < needed)
            def _guarded():
                run(masked=False)
        else:
            run(masked=False)
        # block_id >= needed (cores-rounding spillover) contributes nothing; its
        # (index-map-clamped) DMA is wasted but harmless and at most one tile.

    return kernel


def balanced_bce_loss(logits, targets, *, tile_rows=None, num_cores=None):
    """Pallas TPU implementation of BalancedBinaryCrossEntropyLoss.forward."""
    assert logits.shape == targets.shape, (logits.shape, targets.shape)
    numel = int(logits.size)
    if numel == 0:
        return jnp.float32(jnp.nan)  # torch: mean over an empty tensor is NaN

    dflt_tile, dflt_cores = _chip_defaults()
    tile_rows = int(dflt_tile if tile_rows is None else tile_rows)
    num_cores = int(dflt_cores if num_cores is None else num_cores)

    flat_x = logits.reshape(-1)
    flat_y = targets.reshape(-1)
    full_rows, lane_rem = divmod(numel, LANES)

    if lane_rem == 0 and full_rows >= SUBLANES:
        rows2d = full_rows                      # zero-copy reshape below
    else:
        # TODO(synk): a fully zero-copy path for non-128-aligned numel would need
        # manual 1-D DMA; this pad (<=1023 appended elements, one extra copy) only
        # triggers for lane-misaligned or tiny (<1024 element) inputs.
        padded = _round_up(numel, SUBLANES * LANES)
        flat_x = jnp.pad(flat_x, (0, padded - numel))
        flat_y = jnp.pad(flat_y, (0, padded - numel))
        rows2d = padded // LANES

    x2d = flat_x.reshape(rows2d, LANES)
    y2d = flat_y.reshape(rows2d, LANES)

    tile_rows = max(SUBLANES, (min(tile_rows, rows2d) // SUBLANES) * SUBLANES)
    needed = _cdiv(rows2d, tile_rows)
    cores = max(1, min(num_cores, needed))
    steps = _cdiv(needed, cores)
    spill = cores * steps - needed
    last_partial = (lane_rem != 0) or (rows2d % tile_rows != 0)

    kernel = _make_kernel(tile_rows=tile_rows, steps=steps, needed=needed,
                          spill=spill, last_partial=last_partial,
                          full_rows=full_rows, lane_rem=lane_rem)

    def in_map(c, s):
        # Clamp so spillover steps (from rounding blocks up to the cores axis)
        # never index past the array; their contribution is gated off in-kernel.
        return (jnp.minimum(c * steps + s, needed - 1), 0)

    tile_bytes = tile_rows * LANES * (x2d.dtype.itemsize + y2d.dtype.itemsize)
    vmem_limit = int(max(2 * tile_bytes + (8 << 20), 32 << 20))

    partials = pl.pallas_call(
        kernel,
        out_shape=jax.ShapeDtypeStruct((cores, 3, SUBLANES, LANES), jnp.float32),
        grid_spec=pltpu.PrefetchScalarGridSpec(
            num_scalar_prefetch=0,
            grid=(cores, steps),
            in_specs=[
                pl.BlockSpec((tile_rows, LANES), in_map),
                pl.BlockSpec((tile_rows, LANES), in_map),
            ],
            out_specs=pl.BlockSpec((1, 3, SUBLANES, LANES),
                                   lambda c, s: (c, 0, 0, 0)),
        ),
        compiler_params=pltpu.CompilerParams(
            dimension_semantics=("parallel", "arbitrary"),
            vmem_limit_bytes=vmem_limit),
    )(x2d, y2d)

    # Tiny epilogue: combine per-core partial slabs and compute the scalar loss.
    sums = jnp.sum(partials, axis=(0, 2, 3))        # [S_t, S_a, S_b]
    s_t, s_a, s_b = sums[0], sums[1], sums[2]
    n = jnp.float32(numel)
    num_negative = n - s_t
    pos_weight = num_negative / (s_t + 1e-6)
    total = s_a + (pos_weight - 1.0) * s_b
    return total / n


def _reference_loss(logits, targets):
    """Pure-JAX reference mirroring torch BCEWithLogits(pos_weight, mean)."""
    x = logits.astype(jnp.float32)
    y = targets.astype(jnp.float32)
    num_pos = jnp.sum(y)
    num_neg = jnp.float32(y.size) - num_pos
    pw = num_neg / (num_pos + 1e-6)
    sp = jnp.log1p(jnp.exp(-jnp.abs(x))) + jnp.maximum(-x, 0.0)
    per_elem = (1.0 - y) * x + (1.0 + (pw - 1.0) * y) * sp
    return jnp.mean(per_elem)


if __name__ == "__main__":
    key = jax.random.PRNGKey(0)
    k_logits, k_targets = jax.random.split(key)

    # 1) Small NCHW segmentation-like shape, default (chip-tuned) config.
    shape = (2, 4, 16, 16)
    logits = jax.random.normal(k_logits, shape, dtype=jnp.float32) * 3.0
    targets = jax.random.bernoulli(k_targets, p=0.2, shape=shape).astype(jnp.float32)
    loss = jax.block_until_ready(balanced_bce_loss(logits, targets))
    ref = jax.block_until_ready(_reference_loss(logits, targets))
    assert jnp.allclose(loss, ref, rtol=1e-5, atol=1e-5), (loss, ref)

    # 2) Multi-block grid + explicit two-core split at small size.
    loss2 = jax.block_until_ready(
        balanced_bce_loss(logits, targets, tile_rows=8, num_cores=2))
    assert jnp.allclose(loss2, ref, rtol=1e-5, atol=1e-5), (loss2, ref)

    # 3) Non-128-aligned numel -> lane-remainder + partial-row in-kernel masking.
    shape3 = (2, 1, 33, 65)
    logits3 = jax.random.normal(k_logits, shape3, dtype=jnp.float32) * 3.0
    targets3 = jax.random.bernoulli(k_targets, p=0.3, shape=shape3).astype(jnp.float32)
    loss3 = jax.block_until_ready(balanced_bce_loss(logits3, targets3, tile_rows=16))
    ref3 = jax.block_until_ready(_reference_loss(logits3, targets3))
    assert jnp.allclose(loss3, ref3, rtol=1e-5, atol=1e-5), (loss3, ref3)

    # 4) 128-aligned (zero-copy, no pad) path with several blocks, a partial final
    #    tile and a spill step on the explicit cores axis.
    shape4 = (1, 1, 512, 1000)          # 512000 elements, numel % 128 == 0
    logits4 = jax.random.normal(k_logits, shape4, dtype=jnp.float32) * 2.0
    targets4 = jax.random.bernoulli(k_targets, p=0.35, shape=shape4).astype(jnp.float32)
    loss4 = jax.block_until_ready(
        balanced_bce_loss(logits4, targets4, tile_rows=1536, num_cores=2))
    ref4 = jax.block_until_ready(_reference_loss(logits4, targets4))
    assert jnp.allclose(loss4, ref4, rtol=1e-4, atol=1e-5), (loss4, ref4)

    print("KERNEL_OK")
</pallas_src>

<mosaic_0001>
module attributes {stable_mosaic.version = 11 : i64} {
  func.func @kernel(%arg0: i32, %arg1: i32, %arg2: memref<16x128xf32, #tpu.memory_space<vmem>>, %arg3: memref<16x128xf32, #tpu.memory_space<vmem>>, %arg4: memref<1x3x8x128xf32, #tpu.memory_space<vmem>>) attributes {dimension_semantics = [#tpu.dimension_semantics<parallel>, #tpu.dimension_semantics<arbitrary>], iteration_bounds = array<i64: 1, 1>, scalar_prefetch = 0 : i64, scratch_operands = 0 : i64, tpu.core_type = #tpu.core_type<tc>, window_params = [{transform_indices = @transform_0, window_bounds = array<i64: 16, 128>}, {transform_indices = @transform_1, window_bounds = array<i64: 16, 128>}, {transform_indices = @transform_2, window_bounds = array<i64: 1, 3, 8, 128>}]} {
    %c0_i32 = arith.constant 0 : i32
    %0 = arith.cmpi eq, %arg1, %c0_i32 : i32
    %1 = arith.extui %0 : i1 to i32
    %c0_i32_0 = arith.constant 0 : i32
    %2 = arith.cmpi ne, %1, %c0_i32_0 : i32
    scf.if %2 {
      %cst_36 = arith.constant 0.000000e+00 : f32
      %70 = vector.broadcast %cst_36 : f32 to vector<1x3x8x128xf32>
      %c0_37 = arith.constant 0 : index
      %c0_38 = arith.constant 0 : index
      %c0_39 = arith.constant 0 : index
      %c0_40 = arith.constant 0 : index
      %71 = vector.load %arg4[%c0_37, %c0_38, %c0_39, %c0_40] : memref<1x3x8x128xf32, #tpu.memory_space<vmem>>, vector<1x3x8x128xf32>
      tpu.vector_store %arg4[%c0_37, %c0_38, %c0_39, %c0_40], %70 {strides = array<i32>} : memref<1x3x8x128xf32, #tpu.memory_space<vmem>>, vector<1x3x8x128xf32>,
    } else {
    }
    %cst = arith.constant 0.000000e+00 : f32
    %3 = vector.broadcast %cst : f32 to vector<8x128xf32>
    %c0_i32_1 = arith.constant 0 : i32
    %c8_i32 = arith.constant 8 : i32
    %4 = arith.muli %c0_i32_1, %c8_i32 : i32
    %5 = tpu.assume_multiple %4, 8 : i32
    %6 = arith.index_cast %5 : i32 to index
    %c0 = arith.constant 0 : index
    %7 = vector.load %arg2[%6, %c0] : memref<16x128xf32, #tpu.memory_space<vmem>>, vector<8x128xf32>
    %8 = arith.index_cast %5 : i32 to index
    %c0_2 = arith.constant 0 : index
    %9 = vector.load %arg3[%8, %c0_2] : memref<16x128xf32, #tpu.memory_space<vmem>>, vector<8x128xf32>
    %10 = math.absf %7 : vector<8x128xf32>
    %cst_3 = arith.constant 0.000000e+00 : f32
    %11 = vector.broadcast %cst_3 : f32 to vector<8x128xf32>
    %12 = arith.subf %11, %10 : vector<8x128xf32>
    %13 = math.exp %12 : vector<8x128xf32>
    %14 = math.log1p %13 : vector<8x128xf32>
    %cst_4 = arith.constant 0.000000e+00 : f32
    %15 = vector.broadcast %cst_4 : f32 to vector<8x128xf32>
    %16 = arith.subf %15, %7 : vector<8x128xf32>
    %cst_5 = arith.constant 0.000000e+00 : f32
    %17 = vector.broadcast %cst_5 : f32 to vector<8x128xf32>
    %18 = arith.maximumf %16, %17 : vector<8x128xf32>
    %19 = arith.addf %14, %18 : vector<8x128xf32>
    %cst_6 = arith.constant 1.000000e+00 : f32
    %20 = vector.broadcast %cst_6 : f32 to vector<8x128xf32>
    %21 = arith.subf %20, %9 : vector<8x128xf32>
    %22 = arith.mulf %21, %7 : vector<8x128xf32>
    %23 = arith.addf %22, %19 : vector<8x128xf32>
    %24 = arith.mulf %9, %19 : vector<8x128xf32>
    %25 = arith.addf %3, %9 : vector<8x128xf32>
    %26 = arith.addf %3, %23 : vector<8x128xf32>
    %27 = arith.addf %3, %24 : vector<8x128xf32>
    %c1_i32 = arith.constant 1 : i32
    %c8_i32_7 = arith.constant 8 : i32
    %28 = arith.muli %c1_i32, %c8_i32_7 : i32
    %29 = tpu.assume_multiple %28, 8 : i32
    %30 = arith.index_cast %29 : i32 to index
    %c0_8 = arith.constant 0 : index
    %31 = vector.load %arg2[%30, %c0_8] : memref<16x128xf32, #tpu.memory_space<vmem>>, vector<8x128xf32>
    %32 = arith.index_cast %29 : i32 to index
    %c0_9 = arith.constant 0 : index
    %33 = vector.load %arg3[%32, %c0_9] : memref<16x128xf32, #tpu.memory_space<vmem>>, vector<8x128xf32>
    %34 = math.absf %31 : vector<8x128xf32>
    %cst_10 = arith.constant 0.000000e+00 : f32
    %35 = vector.broadcast %cst_10 : f32 to vector<8x128xf32>
    %36 = arith.subf %35, %34 : vector<8x128xf32>
    %37 = math.exp %36 : vector<8x128xf32>
    %38 = math.log1p %37 : vector<8x128xf32>
    %cst_11 = arith.constant 0.000000e+00 : f32
    %39 = vector.broadcast %cst_11 : f32 to vector<8x128xf32>
    %40 = arith.subf %39, %31 : vector<8x128xf32>
    %cst_12 = arith.constant 0.000000e+00 : f32
    %41 = vector.broadcast %cst_12 : f32 to vector<8x128xf32>
    %42 = arith.maximumf %40, %41 : vector<8x128xf32>
    %43 = arith.addf %38, %42 : vector<8x128xf32>
    %cst_13 = arith.constant 1.000000e+00 : f32
    %44 = vector.broadcast %cst_13 : f32 to vector<8x128xf32>
    %45 = arith.subf %44, %33 : vector<8x128xf32>
    %46 = arith.mulf %45, %31 : vector<8x128xf32>
    %47 = arith.addf %46, %43 : vector<8x128xf32>
    %48 = arith.mulf %33, %43 : vector<8x128xf32>
    %49 = arith.addf %25, %33 : vector<8x128xf32>
    %50 = arith.addf %26, %47 : vector<8x128xf32>
    %51 = arith.addf %27, %48 : vector<8x128xf32>
    %c2_i32 = arith.constant 2 : i32
    %c0_14 = arith.constant 0 : index
    %c0_15 = arith.constant 0 : index
    %c0_16 = arith.constant 0 : index
    %c0_17 = arith.constant 0 : index
    %52 = vector.load %arg4[%c0_14, %c0_15, %c0_16, %c0_17] : memref<1x3x8x128xf32, #tpu.memory_space<vmem>>, vector<1x1x8x128xf32>
    %53 = vector.shape_cast %52 : vector<1x1x8x128xf32> to vector<8x128xf32>
    %54 = arith.addf %53, %49 : vector<8x128xf32>
    %c0_18 = arith.constant 0 : index
    %c0_19 = arith.constant 0 : index
    %c0_20 = arith.constant 0 : index
    %c0_21 = arith.constant 0 : index
    %55 = vector.load %arg4[%c0_18, %c0_19, %c0_20, %c0_21] : memref<1x3x8x128xf32, #tpu.memory_space<vmem>>, vector<1x1x8x128xf32>
    %56 = vector.shape_cast %55 : vector<1x1x8x128xf32> to vector<8x128xf32>
    %57 = vector.shape_cast %54 : vector<8x128xf32> to vector<1x1x8x128xf32>
    tpu.vector_store %arg4[%c0_18, %c0_19, %c0_20, %c0_21], %57 {strides = array<i32>} : memref<1x3x8x128xf32, #tpu.memory_space<vmem>>, vector<1x1x8x128xf32>,
    %c0_22 = arith.constant 0 : index
    %c1 = arith.constant 1 : index
    %c0_23 = arith.constant 0 : index
    %c0_24 = arith.constant 0 : index
    %58 = vector.load %arg4[%c0_22, %c1, %c0_23, %c0_24] : memref<1x3x8x128xf32, #tpu.memory_space<vmem>>, vector<1x1x8x128xf32>
    %59 = vector.shape_cast %58 : vector<1x1x8x128xf32> to vector<8x128xf32>
    %60 = arith.addf %59, %50 : vector<8x128xf32>
    %c0_25 = arith.constant 0 : index
    %c1_26 = arith.constant 1 : index
    %c0_27 = arith.constant 0 : index
    %c0_28 = arith.constant 0 : index
    %61 = vector.load %arg4[%c0_25, %c1_26, %c0_27, %c0_28] : memref<1x3x8x128xf32, #tpu.memory_space<vmem>>, vector<1x1x8x128xf32>
    %62 = vector.shape_cast %61 : vector<1x1x8x128xf32> to vector<8x128xf32>
    %63 = vector.shape_cast %60 : vector<8x128xf32> to vector<1x1x8x128xf32>
    tpu.vector_store %arg4[%c0_25, %c1_26, %c0_27, %c0_28], %63 {strides = array<i32>} : memref<1x3x8x128xf32, #tpu.memory_space<vmem>>, vector<1x1x8x128xf32>,
    %c0_29 = arith.constant 0 : index
    %c2 = arith.constant 2 : index
    %c0_30 = arith.constant 0 : index
    %c0_31 = arith.constant 0 : index
    %64 = vector.load %arg4[%c0_29, %c2, %c0_30, %c0_31] : memref<1x3x8x128xf32, #tpu.memory_space<vmem>>, vector<1x1x8x128xf32>
    %65 = vector.shape_cast %64 : vector<1x1x8x128xf32> to vector<8x128xf32>
    %66 = arith.addf %65, %51 : vector<8x128xf32>
    %c0_32 = arith.constant 0 : index
    %c2_33 = arith.constant 2 : index
    %c0_34 = arith.constant 0 : index
    %c0_35 = arith.constant 0 : index
    %67 = vector.load %arg4[%c0_32, %c2_33, %c0_34, %c0_35] : memref<1x3x8x128xf32, #tpu.memory_space<vmem>>, vector<1x1x8x128xf32>
    %68 = vector.shape_cast %67 : vector<1x1x8x128xf32> to vector<8x128xf32>
    %69 = vector.shape_cast %66 : vector<8x128xf32> to vector<1x1x8x128xf32>
    tpu.vector_store %arg4[%c0_32, %c2_33, %c0_34, %c0_35], %69 {strides = array<i32>} : memref<1x3x8x128xf32, #tpu.memory_space<vmem>>, vector<1x1x8x128xf32>,
    return
  }
  func.func @transform_0(%arg0: i32, %arg1: i32) -> (i32, i32) {
    %c1_i32 = arith.constant 1 : i32
    %0 = arith.muli %arg0, %c1_i32 : i32
    %1 = arith.addi %0, %arg1 : i32
    %c0_i32 = arith.constant 0 : i32
    %2 = arith.minsi %1, %c0_i32 : i32
    %c0_i32_0 = arith.constant 0 : i32
    %c0_i32_1 = arith.constant 0 : i32
    return %2, %c0_i32_0 : i32, i32
  }
  func.func @transform_1(%arg0: i32, %arg1: i32) -> (i32, i32) {
    %c1_i32 = arith.constant 1 : i32
    %0 = arith.muli %arg0, %c1_i32 : i32
    %1 = arith.addi %0, %arg1 : i32
    %c0_i32 = arith.constant 0 : i32
    %2 = arith.minsi %1, %c0_i32 : i32
    %c0_i32_0 = arith.constant 0 : i32
    %c0_i32_1 = arith.constant 0 : i32
    return %2, %c0_i32_0 : i32, i32
  }
  func.func @transform_2(%arg0: i32, %arg1: i32) -> (i32, i32, i32, i32) {
    %c0_i32 = arith.constant 0 : i32
    %c0_i32_0 = arith.constant 0 : i32
    %c0_i32_1 = arith.constant 0 : i32
    %c0_i32_2 = arith.constant 0 : i32
    return %arg0, %c0_i32, %c0_i32_0, %c0_i32_1 : i32, i32, i32, i32
  }
}

</mosaic_0001>

<llo_original>
// kernel: tpu_custom_call.1
$region0: #{tpu_custom_call.1}
  #allocation0 [shape = 'u32[]', space=smem, size = 0x4, offset = 0x4, fixed_abs, tag = 'smem constant byte address 0x4 - core index']
  #allocation1 [shape = 'u32[72,128]{1,0:T(1,128)}', space=vmem, size = 0x9000, scoped, tag = 'internal scratch']
  %s0 = inlined_call_operand.hbm [shape: f32[16,128], index: 0, kind: input, shape index: {}]
  %s1 = inlined_call_operand.hbm [shape: f32[16,128], index: 1, kind: input, shape index: {}]
  %s2 = inlined_call_operand.hbm [shape: f32[1,3,8,128], index: 2, kind: output, shape index: {}]
  %s3 = sld [smem:[#allocation0]]
  $region30: #{tpu_custom_call.1} parent=0
    _
  %s5 = ssub.s32 1, %s3
  %s6 = scalar_select 0, %s5, %s3
  $region1: #{tpu_custom_call.1} parent=0
    #allocation2 [shape = 'u8[8192]{0}', space=vmem, size = 0x2000, scoped, tag = 'input window, operand 0, single buffered']
    #allocation3 [shape = 's32[1]{0}', space=sflag, size = 0x4, scoped, tag = 'scoped memory for tpu_custom_call.1']
    #allocation4 [shape = 's32[1]{0}', space=sflag, size = 0x4, scoped, tag = 'scoped memory for tpu_custom_call.1']
    #allocation5 [shape = 'u8[8192]{0}', space=vmem, size = 0x2000, scoped, tag = 'input window, operand 1, single buffered']
    #allocation6 [shape = 's32[1]{0}', space=sflag, size = 0x4, scoped, tag = 'scoped memory for tpu_custom_call.1']
    #allocation7 [shape = 'u8[12288]{0}', space=vmem, size = 0x3000, scoped, tag = 'output window, operand 0, single buffered']
    %7 = vsyncpa [#allocation3], 0
    %8 = vsyncpa [#allocation6], 0
    %9 = vsyncpa [#allocation4], 0
    // Predicated region
    $region2: #{tpu_custom_call.1} parent=1 // pred_check
      _
    $region3: #{tpu_custom_call.1} parent=1 // pred_check_branch
      %11 = sbr.rel (0) target = $region5
    $region4: #{tpu_custom_call.1} parent=1 // pred_region
      %s12 = sadd.s32 0, 0
      %p13 = scmp.lt.s32.totalorder %s12, 0
      %s14 = scalar_select %p13, %s12, 0
      %s15 = smul.u32 2, %s14
      %17 = vsyncadd [#allocation3], 0
      %s18 = smul.addr %s15, 8
      %s19 = scalar_lea.hbm %s0, %s18
      %s20 = sshll.u32 %s19, 4
      %s21 = int_to_ptr.hbm [resolvable:$true] %s20
      %s22 = sshll.u32 [#allocation2], 4
      %s23 = int_to_ptr.vmem [resolvable:$true] %s22
      %28 = dma.hbm_to_vmem [thread:$0]  %s21, 256, %s23, [#allocation3], 128, 128, 8
    $region5: #{tpu_custom_call.1} parent=1 // pred_fallthru
      _
    // Predicated region
    $region6: #{tpu_custom_call.1} parent=1 // pred_check
      _
    $region7: #{tpu_custom_call.1} parent=1 // pred_check_branch
      %30 = sbr.rel (0) target = $region9
    $region8: #{tpu_custom_call.1} parent=1 // pred_region
      %s31 = sadd.s32 0, 0
      %p32 = scmp.lt.s32.totalorder %s31, 0
      %s33 = scalar_select %p32, %s31, 0
      %s34 = smul.u32 2, %s33
      %36 = vsyncadd [#allocation6], 0
      %s37 = smul.addr %s34, 8
      %s38 = scalar_lea.hbm %s1, %s37
      %s39 = sshll.u32 %s38, 4
      %s40 = int_to_ptr.hbm [resolvable:$true] %s39
      %s41 = sshll.u32 [#allocation5], 4
      %s42 = int_to_ptr.vmem [resolvable:$true] %s41
      %47 = dma.hbm_to_vmem [thread:$0]  %s40, 256, %s42, [#allocation6], 128, 128, 8
    $region9: #{tpu_custom_call.1} parent=1 // pred_fallthru
      _
    // Predicated region
    $region10: #{tpu_custom_call.1} parent=1 // pred_check
      _
    $region11: #{tpu_custom_call.1} parent=1 // pred_check_branch
      %49 = sbr.rel (0) target = $region13
    $region12: #{tpu_custom_call.1} parent=1 // pred_region
      %51 = dma.done [#allocation3], 256
    $region13: #{tpu_custom_call.1} parent=1 // pred_fallthru
      _
    // Predicated region
    $region14: #{tpu_custom_call.1} parent=1 // pred_check
      _
    $region15: #{tpu_custom_call.1} parent=1 // pred_check_branch
      %53 = sbr.rel (0) target = $region17
    $region16: #{tpu_custom_call.1} parent=1 // pred_region
      %55 = dma.done [#allocation6], 256
    $region17: #{tpu_custom_call.1} parent=1 // pred_fallthru
      _
    %s56 = sadd.s32 0, 0
    %p57 = scmp.lt.s32.totalorder %s56, 0
    %s58 = scalar_select %p57, %s56, 0
    %s59 = smul.u32 2, %s58
    %s60 = sadd.s32 0, 0
    %p61 = scmp.lt.s32.totalorder %s60, 0
    %s62 = scalar_select %p61, %s60, 0
    %s63 = smul.u32 2, %s62
    %p64 = scmp.eq.s32.totalorder 0, 0
    // Predicated region
    $region18: #{tpu_custom_call.1} parent=1 // pred_check
      %p65 = pneg %p64
    $region19: #{tpu_custom_call.1} parent=1 // pred_check_branch
      %67 = sbr.rel (%p65) target = $region21
    $region20: #{tpu_custom_call.1} parent=1 // pred_region
      %68 = vst [vmem:[#allocation7] sm:$0xff] 0.0
      %69 = vst [vmem:[#allocation7 + $0x8] sm:$0xff] 0.0
      %70 = vst [vmem:[#allocation7 + $0x10] sm:$0xff] 0.0
    $region21: #{tpu_custom_call.1} parent=1 // pred_fallthru
      _
    %v71 = vld [vmem:[#allocation2] sm:$0xff]
    %v72 = vld [vmem:[#allocation5] sm:$0xff]
    %v73 = vand.u32 2147483647, %v71
    %v74 = vsub.f32 0.0, %v73
    %v75 = vmul.f32 %v74, 1.442695
    %v76 = vpow.pop %v75
    %v77 = vadd.f32 %v76, 1.0
    %v78 = vlog2.pop %v77
    %v79 = vmul.f32 %v78, 0.6931472
    %v80 = vmul.f32 -0.5, %v76
    %v81 = vadd.f32 %v80, 1.0
    %v82 = vmul.f32 %v81, %v76
    %v83 = vand.u32 2147483647, %v76
    %vm84 = vcmp.lt.f32.partialorder %v83, 0.0004427343
    %v85 = vsel %vm84, %v82, %v79
    %v86 = vsub.f32 0.0, %v71
    %v87 = vmax.f32 %v86, 0.0
    %v88 = vadd.f32 %v85, %v87
    %v89 = vsub.f32 1.0, %v72
    %v90 = vmul.f32 %v89, %v71
    %v91 = vadd.f32 %v90, %v88
    %v92 = vmul.f32 %v72, %v88
    %v93 = vadd.f32 %v72, 0.0
    %v94 = vadd.f32 %v91, 0.0
    %v95 = vadd.f32 %v92, 0.0
    %s96 = scalar_lea.vmem [#allocation2], 8
    %v97 = vld [vmem:[%s96] sm:$0xff]
    %s98 = scalar_lea.vmem [#allocation5], 8
    %v99 = vld [vmem:[%s98] sm:$0xff]
    %v100 = vand.u32 2147483647, %v97
    %v101 = vsub.f32 0.0, %v100
    %v102 = vmul.f32 %v101, 1.442695
    %v103 = vpow.pop %v102
    %v104 = vadd.f32 %v103, 1.0
    %v105 = vlog2.pop %v104
    %v106 = vmul.f32 %v105, 0.6931472
    %v107 = vmul.f32 -0.5, %v103
    %v108 = vadd.f32 %v107, 1.0
    %v109 = vmul.f32 %v108, %v103
    %v110 = vand.u32 2147483647, %v103
    %vm111 = vcmp.lt.f32.partialorder %v110, 0.0004427343
    %v112 = vsel %vm111, %v109, %v106
    %v113 = vsub.f32 0.0, %v97
    %v114 = vmax.f32 %v113, 0.0
    %v115 = vadd.f32 %v112, %v114
    %v116 = vsub.f32 1.0, %v99
    %v117 = vmul.f32 %v116, %v97
    %v118 = vadd.f32 %v117, %v115
    %v119 = vmul.f32 %v99, %v115
    %v120 = vadd.f32 %v93, %v99
    %v121 = vadd.f32 %v94, %v118
    %v122 = vadd.f32 %v95, %v119
    %v123 = vld [vmem:[#allocation7] sm:$0xff]
    %v124 = vadd.f32 %v123, %v120
    %125 = vst [vmem:[#allocation7] sm:$0xff] %v124
    %s126 = scalar_lea.vmem [#allocation7], 8
    %v127 = vld [vmem:[%s126] sm:$0xff]
    %v128 = vadd.f32 %v127, %v121
    %129 = vst [vmem:[%s126] sm:$0xff] %v128
    %s130 = scalar_lea.vmem [#allocation7], 16
    %v131 = vld [vmem:[%s130] sm:$0xff]
    %v132 = vadd.f32 %v131, %v122
    %133 = vst [vmem:[%s130] sm:$0xff] %v132
    // Predicated region
    $region22: #{tpu_custom_call.1} parent=1 // pred_check
      _
    $region23: #{tpu_custom_call.1} parent=1 // pred_check_branch
      %135 = sbr.rel (0) target = $region25
    $region24: #{tpu_custom_call.1} parent=1 // pred_region
      %137 = vsyncadd [#allocation4], 0
      %s138 = sshll.u32 [#allocation7], 4
      %s139 = int_to_ptr.vmem [resolvable:$true] %s138
      %s140 = sshll.u32 %s2, 4
      %s141 = int_to_ptr.hbm [resolvable:$true] %s140
      %146 = dma.vmem_to_hbm [thread:$0]  %s139, 384, %s141, [#allocation4], 128, 128, 8
    $region25: #{tpu_custom_call.1} parent=1 // pred_fallthru
      _
    // Predicated region
    $region26: #{tpu_custom_call.1} parent=1 // pred_check
      _
    $region27: #{tpu_custom_call.1} parent=1 // pred_check_branch
      %148 = sbr.rel (0) target = $region29
    $region28: #{tpu_custom_call.1} parent=1 // pred_region
      %150 = dma.done [#allocation4], 384
    $region29: #{tpu_custom_call.1} parent=1 // pred_fallthru
      _
    %151 = vsyncpa [#allocation3], 1
    %152 = vsyncpa [#allocation6], 1
    %153 = vsyncpa [#allocation4], 1

</llo_original>
